<compile_context>
chip_gen: v7x
topology: tpu7x:2x2x1
jax: 0.10.0
libtpu: 0.0.40
codegen_flags: <defaults>
</compile_context>

<pallas_src>
import functools

import jax
import jax.numpy as jnp
from jax import lax
from jax.experimental import pallas as pl
from jax.experimental.pallas import tpu as pltpu


# --------------------------------------------------------------------------
# Kernels
# --------------------------------------------------------------------------
def _dw_kernel(d_ref, w_ref, dw_f32_ref, dw_op_ref):
    """Dw tile = D_tile @ W^T (contract last dims — no transpose feeding the MXU)."""
    dw = lax.dot_general(
        d_ref[...], w_ref[...],
        dimension_numbers=(((1,), (1,)), ((), ())),   # D @ W^T
        preferred_element_type=jnp.float32,
    )
    dw_f32_ref[...] = dw                              # module output (f32)
    dw_op_ref[...] = dw.astype(dw_op_ref.dtype)       # operand-dtype copy for kernel 2


def _outputs_kernel(r_ref, dw_ref, out_ref, *, approx_act):
    """out tile = sigmoid(R_tile @ Dw_tile^T)."""
    x = lax.dot_general(
        r_ref[...], dw_ref[...],
        dimension_numbers=(((1,), (1,)), ((), ())),   # R @ Dw^T
        preferred_element_type=jnp.float32,
    )
    if approx_act:
        # exp + approx reciprocal both use the EUP slot — frees VALU/store
        # cycles in the small-K (MXU mostly idle, writeback-bound) regime.
        y = pl.reciprocal(1.0 + jnp.exp(-x), approx=True)
    else:
        y = jax.nn.sigmoid(x)
    out_ref[...] = y.astype(out_ref.dtype)


# --------------------------------------------------------------------------
# Sizing helpers
# --------------------------------------------------------------------------
def _vmem_limit_bytes():
    """Per-generation scoped-VMEM request, with headroom below physical VMEM."""
    try:
        cap = pltpu.get_tpu_info().vmem_capacity_bytes
    except Exception:
        cap = 64 * 1024 * 1024          # conservative fallback (safe on v7x)
    # ~87.5% of physical: ≈56 MiB on v7x, capped at 112 MiB on v5e/v6e.
    return min((cap * 7) // 8, 112 * 1024 * 1024)


def _select_output_tiles(size_u, size_v, K, op_bytes, out_bytes, budget,
                         tm_max=None, tn_max=None):
    """Largest (tm, tn) output tile whose double-buffered working set fits."""
    ladder = [(2048, 2048), (1024, 2048), (1024, 1024), (512, 1024), (512, 512),
              (256, 512), (256, 256), (128, 256), (128, 128), (64, 128),
              (32, 128), (16, 128), (8, 128)]
    tm = tn = 8
    for tm_cap, tn_cap in ladder:
        if tm_max is not None:
            tm_cap = min(tm_cap, tm_max)
        if tn_max is not None:
            tn_cap = min(tn_cap, tn_max)
        # Full extent is always layout-legal; otherwise keep (8, 128) alignment
        # (tn a multiple of 128 -> unmasked lane-dense stores).
        tm = size_u if size_u <= tm_cap else max(8, (tm_cap // 8) * 8)
        tn = size_v if size_v <= tn_cap else max(128, (tn_cap // 128) * 128)
        need = 2 * (tm + tn) * K * op_bytes + 2 * tm * tn * out_bytes
        if need <= budget:
            break
    return tm, tn


def _select_dw_tile(size_v, K, op_bytes, budget):
    """Largest size_v tile for the Dw kernel (W single-buffered, in/out x2)."""
    tv = 8
    for cap in (2048, 1024, 512, 256, 128, 64, 32, 16, 8):
        tv = size_v if size_v <= cap else max(8, (cap // 8) * 8)
        need = K * K * op_bytes + 2 * tv * K * (2 * op_bytes + 4)
        if need <= budget:
            break
    return tv


# --------------------------------------------------------------------------
# Wrapper
# --------------------------------------------------------------------------
def inner_product_decoder_gei(feature, weight, size_u, size_v, *,
                              precision="bfloat16", out_dtype=jnp.float32,
                              approx_act=True, tm_max=None, tn_max=None):
    """JAX/Pallas equivalent of InnerProductDecoder_gei.forward (eval mode).

    feature: (size_u + size_v, input_dim) float32
    weight:  (input_dim, input_dim) float32 (torch nn.Linear weight layout)
    returns: (outputs (size_u, size_v), R (size_u, input_dim), Dw (size_v, input_dim))

    precision="bfloat16" (default): bf16 operands, f32 MXU accumulation.
    out_dtype: set to jnp.bfloat16 to halve the dominant HBM write stream if
               downstream tolerates it (Dw stays f32 either way).
    """
    total, input_dim = feature.shape
    assert total == size_u + size_v

    R = feature[:size_u]              # glue: slicing stays in plain JAX (exact)
    D_in = feature[size_u:]

    op_dtype = jnp.bfloat16 if precision == "bfloat16" else jnp.float32
    op_bytes = jnp.dtype(op_dtype).itemsize
    out_bytes = jnp.dtype(out_dtype).itemsize

    r_op = R.astype(op_dtype)
    d_op = D_in.astype(op_dtype)
    w_op = weight.astype(op_dtype)

    vmem_limit = _vmem_limit_bytes()
    budget = (vmem_limit * 7) // 10   # leave slack for compiler scratch

    # ---- 1) Dw = D @ W^T (also emit the operand-dtype copy for kernel 2) ----
    tv = _select_dw_tile(size_v, input_dim, op_bytes, budget)
    num_v = pl.cdiv(size_v, tv)
    dw_f32, dw_op = pl.pallas_call(
        _dw_kernel,
        out_shape=(
            jax.ShapeDtypeStruct((size_v, input_dim), jnp.float32),
            jax.ShapeDtypeStruct((size_v, input_dim), op_dtype),
        ),
        grid_spec=pl.GridSpec(
            grid=(num_v,),
            in_specs=[
                pl.BlockSpec((tv, input_dim), lambda v: (v, 0)),
                # W never changes across the grid -> single-buffer it.
                pl.BlockSpec((input_dim, input_dim), lambda v: (0, 0),
                             pipeline_mode=pl.Buffered(1)),
            ],
            out_specs=(
                pl.BlockSpec((tv, input_dim), lambda v: (v, 0)),
                pl.BlockSpec((tv, input_dim), lambda v: (v, 0)),
            ),
        ),
        compiler_params=pltpu.CompilerParams(
            dimension_semantics=("parallel",),
            vmem_limit_bytes=vmem_limit,
        ),
    )(d_op, w_op)

    # ---- 2) outputs = sigmoid(R @ Dw^T) ----
    tm, tn = _select_output_tiles(size_u, size_v, input_dim, op_bytes,
                                  out_bytes, budget, tm_max, tn_max)
    num_i = pl.cdiv(size_u, tm)
    num_j = pl.cdiv(size_v, tn)
    outputs = pl.pallas_call(
        functools.partial(_outputs_kernel, approx_act=approx_act),
        out_shape=jax.ShapeDtypeStruct((size_u, size_v), out_dtype),
        grid_spec=pl.GridSpec(
            grid=(num_i, num_j),
            in_specs=[
                pl.BlockSpec((tm, input_dim), lambda i, j: (i, 0)),   # R tile
                pl.BlockSpec((tn, input_dim), lambda i, j: (j, 0)),   # Dw tile
            ],
            out_specs=pl.BlockSpec((tm, tn), lambda i, j: (i, j)),
        ),
        compiler_params=pltpu.CompilerParams(
            # No reduction axis: every grid point owns its output tile, so
            # both axes are megacore-shardable (keeps both v7x TCs busy).
            dimension_semantics=("parallel", "parallel"),
            vmem_limit_bytes=vmem_limit,
        ),
    )(r_op, dw_op)

    return outputs, R, dw_f32


# --------------------------------------------------------------------------
# Demo / checks
# --------------------------------------------------------------------------
def _xavier_uniform(key, fan_in, fan_out):
    # Matches nn.init.xavier_uniform_ for a (fan_out, fan_in) Linear weight.
    bound = (6.0 / (fan_in + fan_out)) ** 0.5
    return jax.random.uniform(
        key, (fan_out, fan_in), dtype=jnp.float32, minval=-bound, maxval=bound
    )


if __name__ == "__main__":
    key = jax.random.PRNGKey(0)
    k_feat, k_w = jax.random.split(key)

    def run_case(size_u, size_v, input_dim, **kw):
        feature = jax.random.normal(
            k_feat, (size_u + size_v, input_dim), dtype=jnp.float32
        )
        weight = _xavier_uniform(k_w, input_dim, input_dim)
        out, R, Dw = inner_product_decoder_gei(feature, weight, size_u, size_v, **kw)
        jax.block_until_ready((out, R, Dw))
        Dw_ref = feature[size_u:] @ weight.T
        out_ref = jax.nn.sigmoid(feature[:size_u] @ Dw_ref.T)
        return (out, R, Dw), (out_ref, feature[:size_u], Dw_ref)

    # 1) f32 operands, exact sigmoid, single tile — strict parity check.
    (out, R, Dw), (out_r, R_r, Dw_r) = run_case(
        8, 8, 32, precision="float32", approx_act=False)
    assert out.shape == (8, 8) and R.shape == (8, 32) and Dw.shape == (8, 32)
    assert jnp.allclose(out, out_r, atol=1e-5)
    assert jnp.allclose(Dw, Dw_r, atol=1e-5)
    assert jnp.allclose(R, R_r)

    # 2) f32 operands, EUP-approx sigmoid, forced multi-tile + ragged edges.
    (out, R, Dw), (out_r, R_r, Dw_r) = run_case(
        40, 256, 32, precision="float32", tm_max=16, tn_max=128)
    assert out.shape == (40, 256) and Dw.shape == (256, 32)
    assert jnp.allclose(Dw, Dw_r, atol=1e-5)
    assert jnp.allclose(out, out_r, atol=2e-2)   # approx-reciprocal sigmoid
    assert jnp.allclose(R, R_r)

    # 3) default fast path: bf16 operands, f32 MXU accumulation — loose check.
    (out, R, Dw), (out_r, R_r, Dw_r) = run_case(40, 256, 32, tm_max=16, tn_max=128)
    assert jnp.allclose(out, out_r, atol=5e-2)
    assert jnp.allclose(Dw, Dw_r, atol=5e-2)
    assert jnp.allclose(R, R_r)

    print("KERNEL_OK")
</pallas_src>

<mosaic_0001>
module attributes {stable_mosaic.version = 11 : i64} {
  func.func @_dw_kernel(%arg0: i32, %arg1: memref<8x32xf32, #tpu.memory_space<vmem>>, %arg2: memref<32x32xf32, #tpu.memory_space<vmem>>, %arg3: memref<8x32xf32, #tpu.memory_space<vmem>>, %arg4: memref<8x32xf32, #tpu.memory_space<vmem>>) attributes {dimension_semantics = [#tpu.dimension_semantics<parallel>], iteration_bounds = array<i64: 1>, scalar_prefetch = 0 : i64, scratch_operands = 0 : i64, tpu.core_type = #tpu.core_type<tc>, window_params = [{transform_indices = @transform_0, window_bounds = array<i64: 8, 32>}, {pipeline_mode = #tpu.pipeline_mode<synchronous>, transform_indices = @transform_1, window_bounds = array<i64: 32, 32>}, {transform_indices = @transform_2, window_bounds = array<i64: 8, 32>}, {transform_indices = @transform_3, window_bounds = array<i64: 8, 32>}]} {
    %c0 = arith.constant 0 : index
    %c0_0 = arith.constant 0 : index
    %0 = vector.load %arg1[%c0, %c0_0] : memref<8x32xf32, #tpu.memory_space<vmem>>, vector<8x32xf32>
    %c0_1 = arith.constant 0 : index
    %c0_2 = arith.constant 0 : index
    %1 = vector.load %arg2[%c0_1, %c0_2] : memref<32x32xf32, #tpu.memory_space<vmem>>, vector<32x32xf32>
    %cst = arith.constant dense<0.000000e+00> : vector<8x32xf32>
    %2 = tpu.matmul %0, %1, %cst {dimension_numbers = #tpu.dot_dimension_numbers<[1], [1], [0], [0], [0, 0, 1, 0], [], []>} : vector<8x32xf32>, vector<32x32xf32>, vector<8x32xf32> -> vector<8x32xf32>
    %c0_3 = arith.constant 0 : index
    %c0_4 = arith.constant 0 : index
    %3 = vector.load %arg3[%c0_3, %c0_4] : memref<8x32xf32, #tpu.memory_space<vmem>>, vector<8x32xf32>
    tpu.vector_store %arg3[%c0_3, %c0_4], %2 {strides = array<i32>} : memref<8x32xf32, #tpu.memory_space<vmem>>, vector<8x32xf32>,
    %c0_5 = arith.constant 0 : index
    %c0_6 = arith.constant 0 : index
    %4 = vector.load %arg4[%c0_5, %c0_6] : memref<8x32xf32, #tpu.memory_space<vmem>>, vector<8x32xf32>
    tpu.vector_store %arg4[%c0_5, %c0_6], %2 {strides = array<i32>} : memref<8x32xf32, #tpu.memory_space<vmem>>, vector<8x32xf32>,
    return
  }
  func.func @transform_0(%arg0: i32) -> (i32, i32) {
    %c0_i32 = arith.constant 0 : i32
    %c0_i32_0 = arith.constant 0 : i32
    return %arg0, %c0_i32 : i32, i32
  }
  func.func @transform_1(%arg0: i32) -> (i32, i32) {
    %c0_i32 = arith.constant 0 : i32
    %c0_i32_0 = arith.constant 0 : i32
    %c0_i32_1 = arith.constant 0 : i32
    return %c0_i32, %c0_i32_0 : i32, i32
  }
  func.func @transform_2(%arg0: i32) -> (i32, i32) {
    %c0_i32 = arith.constant 0 : i32
    %c0_i32_0 = arith.constant 0 : i32
    return %arg0, %c0_i32 : i32, i32
  }
  func.func @transform_3(%arg0: i32) -> (i32, i32) {
    %c0_i32 = arith.constant 0 : i32
    %c0_i32_0 = arith.constant 0 : i32
    return %arg0, %c0_i32 : i32, i32
  }
}

</mosaic_0001>

<llo_original>
// kernel: tpu_custom_call.1
$region0: #{tpu_custom_call.1}
  #allocation0 [shape = 'u32[]', space=smem, size = 0x4, offset = 0x4, fixed_abs, tag = 'smem constant byte address 0x4 - core index']
  #allocation1 [shape = 'u32[144,128]{1,0:T(1,128)}', space=vmem, size = 0x12000, scoped, tag = 'internal scratch']
  %s0 = inlined_call_operand.hbm [shape: f32[8,32], index: 0, kind: input, shape index: {}]
  %s1 = inlined_call_operand.hbm [shape: f32[32,32], index: 1, kind: input, shape index: {}]
  %s2 = inlined_call_operand.hbm [shape: f32[8,32], index: 2, kind: output, shape index: {0}]
  %s3 = inlined_call_operand.hbm [shape: f32[8,32], index: 3, kind: output, shape index: {1}]
  %4 = xla_tuple %s2, %s3
  %s5 = sld [smem:[#allocation0]]
  $region34: #{tpu_custom_call.1} parent=0
    _
  %s7 = ssub.s32 1, %s5
  %s8 = scalar_select 0, %s7, %s5
  $region1: #{tpu_custom_call.1} parent=0
    #allocation2 [shape = 'u8[4096]{0}', space=vmem, size = 0x1000, scoped, tag = 'input window, operand 0, single buffered']
    #allocation3 [shape = 's32[1]{0}', space=sflag, size = 0x4, scoped, tag = 'scoped memory for tpu_custom_call.1']
    #allocation4 [shape = 's32[1]{0}', space=sflag, size = 0x4, scoped, tag = 'scoped memory for tpu_custom_call.1']
    #allocation5 [shape = 'u8[16384]{0}', space=vmem, size = 0x4000, scoped, tag = 'input window, operand 1, single buffered']
    #allocation6 [shape = 's32[1]{0}', space=sflag, size = 0x4, scoped, tag = 'scoped memory for tpu_custom_call.1']
    #allocation7 [shape = 'u8[4096]{0}', space=vmem, size = 0x1000, scoped, tag = 'output window, operand 0, single buffered']
    #allocation8 [shape = 'u8[4096]{0}', space=vmem, size = 0x1000, scoped, tag = 'output window, operand 1, single buffered']
    #allocation9 [shape = 's32[1]{0}', space=sflag, size = 0x4, scoped, tag = 'scoped memory for tpu_custom_call.1']
    %9 = vsyncpa [#allocation3], 0
    %10 = vsyncpa [#allocation6], 0
    %11 = vsyncpa [#allocation4], 0
    %12 = vsyncpa [#allocation9], 0
    // Predicated region
    $region2: #{tpu_custom_call.1} parent=1 // pred_check
      _
    $region3: #{tpu_custom_call.1} parent=1 // pred_check_branch
      %14 = sbr.rel (0) target = $region5
    $region4: #{tpu_custom_call.1} parent=1 // pred_region
      %s16 = ssub.s32 128, 128
      %17 = vsyncadd [#allocation3], %s16
      %s19 = sshll.u32 [#allocation2], 4
      %s20 = int_to_ptr.vmem [resolvable:$true] %s19
      %22 = dma.hbm_to_vmem [thread:$0]  %s0, 128, %s20, [#allocation3]
    $region5: #{tpu_custom_call.1} parent=1 // pred_fallthru
      _
    // Predicated region
    $region6: #{tpu_custom_call.1} parent=1 // pred_check
      _
    $region7: #{tpu_custom_call.1} parent=1 // pred_check_branch
      %24 = sbr.rel (0) target = $region9
    $region8: #{tpu_custom_call.1} parent=1 // pred_region
      %s26 = ssub.s32 512, 512
      %27 = vsyncadd [#allocation6], %s26
      %s28 = sshll.u32 [#allocation5], 4
      %s29 = int_to_ptr.vmem [resolvable:$true] %s28
      %34 = dma.hbm_to_vmem [thread:$0]  %s1, 512, %s29, [#allocation6], 128, 128, 8
    $region9: #{tpu_custom_call.1} parent=1 // pred_fallthru
      _
    // Predicated region
    $region10: #{tpu_custom_call.1} parent=1 // pred_check
      _
    $region11: #{tpu_custom_call.1} parent=1 // pred_check_branch
      %36 = sbr.rel (0) target = $region13
    $region12: #{tpu_custom_call.1} parent=1 // pred_region
      %37 = dma.done [#allocation3], 128
    $region13: #{tpu_custom_call.1} parent=1 // pred_fallthru
      _
    // Predicated region
    $region14: #{tpu_custom_call.1} parent=1 // pred_check
      _
    $region15: #{tpu_custom_call.1} parent=1 // pred_check_branch
      %39 = sbr.rel (0) target = $region17
    $region16: #{tpu_custom_call.1} parent=1 // pred_region
      %40 = dma.done [#allocation6], 512
    $region17: #{tpu_custom_call.1} parent=1 // pred_fallthru
      _
    %v41 = vld [vmem:[#allocation2] sm:$0xff]
    %v42 = vld [vmem:[#allocation5] sm:$0xff]
    %v43 = vld [vmem:[#allocation5 + $0x8] sm:$0xff]
    %v44 = vld [vmem:[#allocation5 + $0x10] sm:$0xff]
    %v45 = vld [vmem:[#allocation5 + $0x18] sm:$0xff]
    %vm46 = vcmask 261120
    %v48 = vsel %vm46, %v41, 0
    %v51 = vsel %vm46, %v42, 0
    %v54 = vsel %vm46, %v43, 0
    %v57 = vsel %vm46, %v44, 0
    %v60 = vsel %vm46, %v45, 0
    %62 = vmatprep.subr.mxu0 0.0
    %63 = vmatpush1.xpose.msra.mxu0 %v51
    %64 = vmatprep.subr.mxu0 0.0
    %65 = vmatpush1.xpose.msra.mxu0 %v54
    %66 = vmatprep.subr.mxu0 0.0
    %67 = vmatpush1.xpose.msra.mxu0 %v57
    %68 = vmatprep.subr.mxu0 0.0
    %69 = vmatpush1.xpose.msra.mxu0 %v60
    %70 = vmatprep.subr.mxu0 0.0
    %71 = vmatpush1.xpose.msra.mxu0 0.0
    %72 = vmatprep.subr.mxu0 0.0
    %73 = vmatpush1.xpose.msra.mxu0 0.0
    %74 = vmatprep.subr.mxu0 0.0
    %75 = vmatpush1.xpose.msra.mxu0 0.0
    %76 = vmatprep.subr.mxu0 0.0
    %77 = vmatpush1.xpose.msra.mxu0 0.0
    %78 = vmatprep.subr.mxu0 0.0
    %79 = vmatpush1.xpose.msra.mxu0 0.0
    %80 = vmatprep.subr.mxu0 0.0
    %81 = vmatpush1.xpose.msra.mxu0 0.0
    %82 = vmatprep.subr.mxu0 0.0
    %83 = vmatpush1.xpose.msra.mxu0 0.0
    %84 = vmatprep.subr.mxu0 0.0
    %85 = vmatpush1.xpose.msra.mxu0 0.0
    %86 = vmatprep.subr.mxu0 0.0
    %87 = vmatpush1.xpose.msra.mxu0 0.0
    %88 = vmatprep.subr.mxu0 0.0
    %89 = vmatpush1.xpose.msra.mxu0 0.0
    %90 = vmatprep.subr.mxu0 0.0
    %91 = vmatpush1.xpose.msra.mxu0 0.0
    %92 = vmatprep.subr.mxu0 0.0
    %93 = vmatpush1.xpose.msra.mxu0 0.0
    %94 = vmatprep.subr.mxu0 0.0
    %95 = vmatpush1.xpose.msra.mxu0 0.0
    %96 = vmatprep.subr.mxu0 0.0
    %97 = vmatpush1.xpose.msra.mxu0 0.0
    %98 = vmatprep.subr.mxu0 0.0
    %99 = vmatpush1.xpose.msra.mxu0 0.0
    %100 = vmatprep.subr.mxu0 0.0
    %101 = vmatpush1.xpose.msra.mxu0 0.0
    %102 = vmatprep.subr.mxu0 0.0
    %103 = vmatpush1.xpose.msra.mxu0 0.0
    %104 = vmatprep.subr.mxu0 0.0
    %105 = vmatpush1.xpose.msra.mxu0 0.0
    %106 = vmatprep.subr.mxu0 0.0
    %107 = vmatpush1.xpose.msra.mxu0 0.0
    %108 = vmatprep.subr.mxu0 0.0
    %109 = vmatpush1.xpose.msra.mxu0 0.0
    %110 = vmatprep.subr.mxu0 0.0
    %111 = vmatpush1.xpose.msra.mxu0 0.0
    %112 = vmatprep.subr.mxu0 0.0
    %113 = vmatpush1.xpose.msra.mxu0 0.0
    %114 = vmatprep.subr.mxu0 0.0
    %115 = vmatpush1.xpose.msra.mxu0 0.0
    %116 = vmatprep.subr.mxu0 0.0
    %117 = vmatpush1.xpose.msra.mxu0 0.0
    %118 = vmatprep.subr.mxu0 0.0
    %119 = vmatpush1.xpose.msra.mxu0 0.0
    %120 = vmatprep.subr.mxu0 0.0
    %121 = vmatpush1.xpose.msra.mxu0 0.0
    %122 = vmatprep.subr.mxu0 0.0
    %123 = vmatpush1.xpose.msra.mxu0 0.0
    %124 = vmatprep.subr.mxu0 0.0
    %125 = vmatpush1.xpose.msra.mxu0 0.0
    %126 = vmatprep.mubr.f32.mxu0 0.0
    %127 = vmatmul.mubr.f32.gmra.mrb[0].mxu0 %v48
    %v128 = vpop.f32.mrb[0].mxu0
    %v129 = vadd.f32 0.0, %v128
    %v130 = vpop.f32.mrb[0].mxu0
    %131 = vdwg.mxu0
    %132 = vst.msk [vmem:[#allocation7] sm:$0xff] %vm46, %v129
    %133 = vst.msk [vmem:[#allocation8] sm:$0xff] %vm46, %v129
    // Predicated region
    $region18: #{tpu_custom_call.1} parent=1 // pred_check
      _
    $region19: #{tpu_custom_call.1} parent=1 // pred_check_branch
      %135 = sbr.rel (0) target = $region21
    $region20: #{tpu_custom_call.1} parent=1 // pred_region
      %s137 = ssub.s32 128, 128
      %138 = vsyncadd [#allocation4], %s137
      %s140 = sshll.u32 [#allocation7], 4
      %s141 = int_to_ptr.vmem [resolvable:$true] %s140
      %143 = dma.vmem_to_hbm [thread:$0]  %s141, 128, %s2, [#allocation4]
    $region21: #{tpu_custom_call.1} parent=1 // pred_fallthru
      _
    // Predicated region
    $region22: #{tpu_custom_call.1} parent=1 // pred_check
      _
    $region23: #{tpu_custom_call.1} parent=1 // pred_check_branch
      %145 = sbr.rel (0) target = $region25
    $region24: #{tpu_custom_call.1} parent=1 // pred_region
      %s147 = ssub.s32 128, 128
      %148 = vsyncadd [#allocation9], %s147
      %s150 = sshll.u32 [#allocation8], 4
      %s151 = int_to_ptr.vmem [resolvable:$true] %s150
      %153 = dma.vmem_to_hbm [thread:$0]  %s151, 128, %s3, [#allocation9]
    $region25: #{tpu_custom_call.1} parent=1 // pred_fallthru
      _
    // Predicated region
    $region26: #{tpu_custom_call.1} parent=1 // pred_check
      _
    $region27: #{tpu_custom_call.1} parent=1 // pred_check_branch
      %155 = sbr.rel (0) target = $region29
    $region28: #{tpu_custom_call.1} parent=1 // pred_region
      %156 = dma.done [#allocation4], 128
    $region29: #{tpu_custom_call.1} parent=1 // pred_fallthru
      _
    // Predicated region
    $region30: #{tpu_custom_call.1} parent=1 // pred_check
      _
    $region31: #{tpu_custom_call.1} parent=1 // pred_check_branch
      %158 = sbr.rel (0) target = $region33
    $region32: #{tpu_custom_call.1} parent=1 // pred_region
      %159 = dma.done [#allocation9], 128
    $region33: #{tpu_custom_call.1} parent=1 // pred_fallthru
      _
    %160 = vsyncpa [#allocation3], 1
    %161 = vsyncpa [#allocation6], 1
    %162 = vsyncpa [#allocation4], 1
    %163 = vsyncpa [#allocation9], 1

</llo_original>
